<compile_context>
chip_gen: v6e
topology: v6e:2x2x1
jax: 0.10.0
libtpu: 0.0.40
codegen_flags: <defaults>
</compile_context>

<pallas_src>
import functools
import math

import jax
import jax.numpy as jnp
from jax.experimental import pallas as pl
from jax.experimental.pallas import tpu as pltpu


def _adain_rows_kernel(ya_ref, yb_ref, x_ref, o_ref, *, eps):
    # x_ref: (R_TILE, HW); ya_ref/yb_ref: (R_TILE, 1). Pure VPU/EUP, mem-bound.
    x = x_ref[...]                                          # (R, HW) f32
    mu = jnp.mean(x, axis=1, keepdims=True)                 # (R, 1)
    ex2 = jnp.mean(x * x, axis=1, keepdims=True)            # (R, 1)
    var = jnp.maximum(ex2 - mu * mu, 0.0)                   # clamp(min=0)
    inv_std = jax.lax.rsqrt(var + eps)                      # (R, 1)
    scale = ya_ref[...] * inv_std                           # fold y_a into scale
    o_ref[...] = scale * (x - mu) + yb_ref[...]             # broadcast over HW


def adain_forward(x, y, weight, bias, *, dim_out, eps=1e-8):
    """x: (B, C, H, W) NCHW, y: (B, dimIn), weight: (2*dimOut, dimIn), bias: (2*dimOut,)."""
    B, C, H, W = x.shape
    assert C == dim_out, "AdaIN requires nChannel == dimOut"
    dim_in = y.shape[1]
    hw = H * W
    rows = B * C

    # ---- hoisted style GEMM (He scale folded into params) -------------------
    w_scale = math.sqrt(2.0 / dim_in)                       # He constant, lrMul=1
    w_scaled = weight.astype(jnp.float32) * w_scale         # (2*dimOut, dimIn)
    b_scaled = bias.astype(jnp.float32) * w_scale           # (2*dimOut,)
    style = y.astype(jnp.float32) @ w_scaled.T + b_scaled   # (B, 2*dimOut)
    y_a = style[:, :dim_out].reshape(rows, 1)               # (B*C, 1)
    y_b = style[:, dim_out:].reshape(rows, 1)               # (B*C, 1)

    # ---- fuse (B, C) -> rows and pick a row tile -----------------------------
    x_rows = x.reshape(rows, hw).astype(jnp.float32)

    bytes_per_row = hw * 4
    max_tile_bytes = 8 << 20                                # ~8 MiB per tile
    r_tile = max(8, (max_tile_bytes // max(bytes_per_row, 1)) // 8 * 8)
    rows_padded = -(-rows // 8) * 8                         # sublane multiple
    r_tile = min(r_tile, rows_padded)
    rows_padded = -(-rows_padded // r_tile) * r_tile        # multiple of tile
    # TODO(synk): if HW is so large that an 8-row tile exceeds VMEM, a two-pass
    # (stats accumulation over HW tiles, then apply) scheme would be needed.

    pad = rows_padded - rows
    if pad:
        x_rows = jnp.pad(x_rows, ((0, pad), (0, 0)))
        y_a = jnp.pad(y_a, ((0, pad), (0, 0)))
        y_b = jnp.pad(y_b, ((0, pad), (0, 0)))

    grid = (rows_padded // r_tile,)
    kernel = functools.partial(_adain_rows_kernel, eps=eps)

    out = pl.pallas_call(
        kernel,
        out_shape=jax.ShapeDtypeStruct((rows_padded, hw), jnp.float32),
        grid=grid,
        in_specs=[
            pl.BlockSpec((r_tile, 1), lambda i: (i, 0)),    # y_a column per tile
            pl.BlockSpec((r_tile, 1), lambda i: (i, 0)),    # y_b column per tile
            pl.BlockSpec((r_tile, hw), lambda i: (i, 0)),   # x row chunk
        ],
        out_specs=pl.BlockSpec((r_tile, hw), lambda i: (i, 0)),
        compiler_params=pltpu.CompilerParams(
            dimension_semantics=("parallel",),
            vmem_limit_bytes=48 << 20,
        ),
    )(y_a, y_b, x_rows)

    return out[:rows].reshape(B, C, H, W)


def adain_reference(x, y, weight, bias, *, dim_out, eps=1e-8):
    """Pure-JAX reference matching the PyTorch module semantics."""
    B, C, H, W = x.shape
    tmp = x.reshape(B, C, -1)
    mu = tmp.mean(axis=2).reshape(B, C, 1, 1)
    var = jnp.maximum(
        (tmp * tmp).mean(axis=2).reshape(B, C, 1, 1) - mu * mu, 0.0)
    xhat = (x - mu) * jax.lax.rsqrt(var + eps)
    w_scale = math.sqrt(2.0 / y.shape[1])
    style = (y @ weight.T + bias) * w_scale                 # (B, 2*dimOut)
    y_a = style[:, :dim_out].reshape(B, dim_out, 1, 1)
    y_b = style[:, dim_out:].reshape(B, dim_out, 1, 1)
    return y_a * xhat + y_b


if __name__ == "__main__":
    # Small shapes consistent with the module: x (B, dimOut, H, W), y (B, dimIn).
    B, dim_in, dim_out, H, W = 2, 8, 4, 16, 16
    eps = 1e-8

    key = jax.random.PRNGKey(0)
    kx, ky, kw = jax.random.split(key, 3)

    x = jax.random.normal(kx, (B, dim_out, H, W), dtype=jnp.float32)
    y = jax.random.normal(ky, (B, dim_in), dtype=jnp.float32)

    # EqualizedLinear params: weight ~ N(0, 1) (He scale applied at runtime),
    # bias initialized to zero (initBiasToZero=True).
    weight = jax.random.normal(kw, (2 * dim_out, dim_in), dtype=jnp.float32)
    bias = jnp.zeros((2 * dim_out,), dtype=jnp.float32)

    out = adain_forward(x, y, weight, bias, dim_out=dim_out, eps=eps)
    out = jax.block_until_ready(out)

    ref = adain_reference(x, y, weight, bias, dim_out=dim_out, eps=eps)
    assert out.shape == (B, dim_out, H, W)
    assert jnp.allclose(out, ref, atol=1e-4, rtol=1e-4), "mismatch vs reference"

    print("KERNEL_OK")
</pallas_src>

<mosaic_0001>
module attributes {stable_mosaic.version = 11 : i64} {
  func.func @_adain_rows_kernel(%arg0: i32, %arg1: memref<8x1xf32, #tpu.memory_space<vmem>>, %arg2: memref<8x1xf32, #tpu.memory_space<vmem>>, %arg3: memref<8x256xf32, #tpu.memory_space<vmem>>, %arg4: memref<8x256xf32, #tpu.memory_space<vmem>>) attributes {dimension_semantics = [#tpu.dimension_semantics<parallel>], iteration_bounds = array<i64: 1>, scalar_prefetch = 0 : i64, scratch_operands = 0 : i64, tpu.core_type = #tpu.core_type<tc>, window_params = [{transform_indices = @transform_0, window_bounds = array<i64: 8, 1>}, {transform_indices = @transform_1, window_bounds = array<i64: 8, 1>}, {transform_indices = @transform_2, window_bounds = array<i64: 8, 256>}, {transform_indices = @transform_3, window_bounds = array<i64: 8, 256>}]} {
    %c0 = arith.constant 0 : index
    %c0_0 = arith.constant 0 : index
    %0 = vector.load %arg3[%c0, %c0_0] : memref<8x256xf32, #tpu.memory_space<vmem>>, vector<8x256xf32>
    %cst = arith.constant dense<0.000000e+00> : vector<8xf32>
    %1 = vector.multi_reduction <add>, %0, %cst [1] : vector<8x256xf32> to vector<8xf32>
    %2 = vector.shape_cast %1 : vector<8xf32> to vector<8x1xf32>
    %cst_1 = arith.constant 2.560000e+02 : f32
    %3 = vector.broadcast %cst_1 : f32 to vector<8x1xf32>
    %4 = arith.divf %2, %3 : vector<8x1xf32>
    %5 = arith.mulf %0, %0 : vector<8x256xf32>
    %cst_2 = arith.constant dense<0.000000e+00> : vector<8xf32>
    %6 = vector.multi_reduction <add>, %5, %cst_2 [1] : vector<8x256xf32> to vector<8xf32>
    %7 = vector.shape_cast %6 : vector<8xf32> to vector<8x1xf32>
    %cst_3 = arith.constant 2.560000e+02 : f32
    %8 = vector.broadcast %cst_3 : f32 to vector<8x1xf32>
    %9 = arith.divf %7, %8 : vector<8x1xf32>
    %10 = arith.mulf %4, %4 : vector<8x1xf32>
    %11 = arith.subf %9, %10 : vector<8x1xf32>
    %cst_4 = arith.constant 0.000000e+00 : f32
    %12 = vector.broadcast %cst_4 : f32 to vector<8x1xf32>
    %13 = arith.maximumf %11, %12 : vector<8x1xf32>
    %cst_5 = arith.constant 9.99999993E-9 : f32
    %14 = vector.broadcast %cst_5 : f32 to vector<8x1xf32>
    %15 = arith.addf %13, %14 : vector<8x1xf32>
    %16 = math.rsqrt %15 : vector<8x1xf32>
    %c0_6 = arith.constant 0 : index
    %c0_7 = arith.constant 0 : index
    %17 = vector.load %arg1[%c0_6, %c0_7] : memref<8x1xf32, #tpu.memory_space<vmem>>, vector<8x1xf32>
    %18 = arith.mulf %17, %16 : vector<8x1xf32>
    %19 = vector.broadcast %4 : vector<8x1xf32> to vector<8x256xf32>
    %20 = arith.subf %0, %19 : vector<8x256xf32>
    %21 = vector.broadcast %18 : vector<8x1xf32> to vector<8x256xf32>
    %22 = arith.mulf %21, %20 : vector<8x256xf32>
    %c0_8 = arith.constant 0 : index
    %c0_9 = arith.constant 0 : index
    %23 = vector.load %arg2[%c0_8, %c0_9] : memref<8x1xf32, #tpu.memory_space<vmem>>, vector<8x1xf32>
    %24 = vector.broadcast %23 : vector<8x1xf32> to vector<8x256xf32>
    %25 = arith.addf %22, %24 : vector<8x256xf32>
    %c0_10 = arith.constant 0 : index
    %c0_11 = arith.constant 0 : index
    %26 = vector.load %arg4[%c0_10, %c0_11] : memref<8x256xf32, #tpu.memory_space<vmem>>, vector<8x256xf32>
    tpu.vector_store %arg4[%c0_10, %c0_11], %25 {strides = array<i32>} : memref<8x256xf32, #tpu.memory_space<vmem>>, vector<8x256xf32>,
    return
  }
  func.func @transform_0(%arg0: i32) -> (i32, i32) {
    %c0_i32 = arith.constant 0 : i32
    %c0_i32_0 = arith.constant 0 : i32
    return %arg0, %c0_i32 : i32, i32
  }
  func.func @transform_1(%arg0: i32) -> (i32, i32) {
    %c0_i32 = arith.constant 0 : i32
    %c0_i32_0 = arith.constant 0 : i32
    return %arg0, %c0_i32 : i32, i32
  }
  func.func @transform_2(%arg0: i32) -> (i32, i32) {
    %c0_i32 = arith.constant 0 : i32
    %c0_i32_0 = arith.constant 0 : i32
    return %arg0, %c0_i32 : i32, i32
  }
  func.func @transform_3(%arg0: i32) -> (i32, i32) {
    %c0_i32 = arith.constant 0 : i32
    %c0_i32_0 = arith.constant 0 : i32
    return %arg0, %c0_i32 : i32, i32
  }
}

</mosaic_0001>

<llo_original>
// kernel: tpu_custom_call.1
$region0: #{tpu_custom_call.1}
  #allocation0 [shape = 'u32[]', space=smem, size = 0x4, offset = 0x4, fixed_abs, tag = 'smem constant byte address 0x4 - core index']
  #allocation1 [shape = 'u32[144,128]{1,0:T(1,128)}', space=vmem, size = 0x12000, scoped, tag = 'internal scratch']
  %s0 = inlined_call_operand.vmem [shape: f32[8,1], index: 0, kind: input, shape index: {}]
  %s1 = inlined_call_operand.vmem [shape: f32[8,1], index: 1, kind: input, shape index: {}]
  %s2 = inlined_call_operand.vmem [shape: f32[8,256], index: 2, kind: input, shape index: {}]
  %s3 = inlined_call_operand.hbm [shape: f32[8,256], index: 3, kind: output, shape index: {}]
  %s4 = sld [smem:[#allocation0]]
  $region22: #{tpu_custom_call.1} parent=0
    _
  %s6 = ssub.s32 1, %s4
  %s7 = scalar_select 0, %s6, %s4
  $region1: #{tpu_custom_call.1} parent=0
    #allocation2 [shape = 'u8[8192]{0}', space=vmem, size = 0x2000, scoped, tag = 'output window, operand 0, single buffered']
    #allocation3 [shape = 's32[1]{0}', space=sflag, size = 0x4, scoped, tag = 'scoped memory for tpu_custom_call.1']
    %8 = vsyncpa [#allocation3], 0
    // Predicated region
    $region2: #{tpu_custom_call.1} parent=1 // pred_check
      _
    $region3: #{tpu_custom_call.1} parent=1 // pred_check_branch
      %10 = sbr.rel (0) target = $region5
    $region4: #{tpu_custom_call.1} parent=1 // pred_region
      _
    $region5: #{tpu_custom_call.1} parent=1 // pred_fallthru
      _
    // Predicated region
    $region6: #{tpu_custom_call.1} parent=1 // pred_check
      _
    $region7: #{tpu_custom_call.1} parent=1 // pred_check_branch
      %12 = sbr.rel (0) target = $region9
    $region8: #{tpu_custom_call.1} parent=1 // pred_region
      _
    $region9: #{tpu_custom_call.1} parent=1 // pred_fallthru
      _
    // Predicated region
    $region10: #{tpu_custom_call.1} parent=1 // pred_check
      _
    $region11: #{tpu_custom_call.1} parent=1 // pred_check_branch
      %14 = sbr.rel (0) target = $region13
    $region12: #{tpu_custom_call.1} parent=1 // pred_region
      _
    $region13: #{tpu_custom_call.1} parent=1 // pred_fallthru
      _
    %v15 = vld [vmem:[%s2] sm:$0xff]
    %v16 = vld [vmem:[%s2 + $0x8] sm:$0xff]
    %v17 = vadd.f32 %v15, %v16
    %18 = vadd.xlane.f32.xlu0 %v17
    %v19 = vpop.xlane.xlu0 %18
    %v20 = vrcp.pop 256.0
    %v21 = vmul.f32 %v19, %v20
    %v22 = vmul.f32 %v15, %v15
    %v23 = vmul.f32 %v16, %v16
    %v24 = vadd.f32 %v22, %v23
    %25 = vadd.xlane.f32.xlu0 %v24
    %v26 = vpop.xlane.xlu0 %25
    %v27 = vmul.f32 %v26, %v20
    %v28 = vmul.f32 %v21, %v21
    %v29 = vsub.f32 %v27, %v28
    %v30 = vmax.f32 %v29, 0.0
    %v31 = vadd.f32 %v30, 1e-08
    %v32 = vrsqrt.pop %v31
    %v33 = vld [vmem:[%s0] sm:$0xff]
    %v34 = vmul.f32 %v33, %v32
    %v35 = vsub.f32 %v15, %v21
    %v36 = vsub.f32 %v16, %v21
    %38 = vset.pattern.permute.xlu0 0
    %39 = vperm.xlu0 %38, %v34
    %v40 = vpop.permute.xlu0 %39
    %v42 = vmul.f32 %v40, %v35
    %v43 = vmul.f32 %v40, %v36
    %v44 = vld [vmem:[%s1] sm:$0xff]
    %46 = vset.pattern.permute.xlu0 0
    %47 = vperm.xlu0 %46, %v44
    %v48 = vpop.permute.xlu0 %47
    %v50 = vadd.f32 %v42, %v48
    %v51 = vadd.f32 %v43, %v48
    %52 = vst [vmem:[#allocation2] sm:$0xff] %v50
    %53 = vst [vmem:[#allocation2 + $0x8] sm:$0xff] %v51
    // Predicated region
    $region14: #{tpu_custom_call.1} parent=1 // pred_check
      _
    $region15: #{tpu_custom_call.1} parent=1 // pred_check_branch
      %55 = sbr.rel (0) target = $region17
    $region16: #{tpu_custom_call.1} parent=1 // pred_region
      %s57 = ssub.s32 256, 256
      %58 = vsyncadd [#allocation3], %s57
      %s60 = sshll.u32 [#allocation2], 4
      %s61 = int_to_ptr.vmem [resolvable:$true] %s60
      %63 = dma.vmem_to_hbm [thread:$0]  %s61, 256, %s3, [#allocation3]
    $region17: #{tpu_custom_call.1} parent=1 // pred_fallthru
      _
    // Predicated region
    $region18: #{tpu_custom_call.1} parent=1 // pred_check
      _
    $region19: #{tpu_custom_call.1} parent=1 // pred_check_branch
      %65 = sbr.rel (0) target = $region21
    $region20: #{tpu_custom_call.1} parent=1 // pred_region
      %66 = dma.done [#allocation3], 256
    $region21: #{tpu_custom_call.1} parent=1 // pred_fallthru
      _
    %67 = vsyncpa [#allocation3], 1

</llo_original>
